<compile_context>
chip_gen: v7x
topology: tpu7x:2x2x1
jax: 0.10.0
libtpu: 0.0.40
codegen_flags: <defaults>
</compile_context>

<pallas_src>
import jax
import jax.numpy as jnp
from jax.experimental import pallas as pl
from jax.experimental.pallas import tpu as pltpu


def _round_up(x, m):
    return (x + m - 1) // m * m


def _link_predictor_kernel(zs_ref, zd_ref, w_ref, b_ref, wf_ref, bf_ref, out_ref):
    # Fused projection: [z_src | z_dst] @ [[W_src], [W_dst]] + (b_src + b_dst)
    z_cat = jnp.concatenate([zs_ref[...], zd_ref[...]], axis=-1)          # (T, 2*Cp)
    h = jnp.dot(z_cat, w_ref[...], preferred_element_type=jnp.float32)    # MXU, f32 acc
    h = h + b_ref[...]                                                    # f32 epilogue
    h = jnp.maximum(h, 0.0)                                               # relu (VPU)

    # Final 1-unit projection on VPU + XLU (a 1-column MXU pass would waste the
    # systolic array) with a lane-dense store: transpose h once (XLU) so the
    # batch axis lies along lanes, broadcast-multiply by w_final (Cp, 1) and
    # reduce over sublanes.
    h_t = h.T                                                             # (Cp, T)
    logits = jnp.sum(h_t * wf_ref[...], axis=0, keepdims=True)            # (1, T)
    logits = logits + bf_ref[0, 0]                                        # SMEM scalar
    out_ref[...] = jax.nn.sigmoid(logits)[None].astype(out_ref.dtype)     # (1, 1, T)


def link_predictor(z_src, z_dst, params, *, tile_n=256, compute_dtype=jnp.float32):
    """params: w_src (C,C), b_src (1,C), w_dst (C,C), b_dst (1,C),
    w_final (C,1), b_final (1,1). Weights are stored transposed to (in, out).

    compute_dtype: dtype fed to the MXU (jnp.bfloat16 recommended on v6e/v7x;
    accumulation and the relu/sigmoid epilogue always stay in float32).
    """
    n, c = z_src.shape
    c_pad = _round_up(c, 128)            # lane-aligned feature dim
    n_pad = _round_up(n, tile_n)         # tile-aligned batch dim
    num_tiles = n_pad // tile_n

    def pad2(x, rows, cols):
        if x.shape == (rows, cols):
            return x
        return jnp.pad(x, ((0, rows - x.shape[0]), (0, cols - x.shape[1])))

    zs = pad2(z_src, n_pad, c_pad).astype(compute_dtype)
    zd = pad2(z_dst, n_pad, c_pad).astype(compute_dtype)

    # Fused (stacked) projection weights + pre-summed bias.
    w_fused = jnp.concatenate(
        [pad2(params["w_src"], c_pad, c_pad),
         pad2(params["w_dst"], c_pad, c_pad)], axis=0).astype(compute_dtype)      # (2Cp, Cp)
    b_fused = pad2(params["b_src"] + params["b_dst"], 1, c_pad).astype(jnp.float32)  # (1, Cp)
    w_final = pad2(params["w_final"], c_pad, 1).astype(jnp.float32)                  # (Cp, 1)
    b_final = params["b_final"].reshape(1, 1).astype(jnp.float32)                    # (1, 1)

    itemsize = jnp.dtype(compute_dtype).itemsize
    cost = pl.CostEstimate(
        flops=2 * n_pad * (2 * c_pad) * c_pad + 4 * n_pad * c_pad,
        transcendentals=n_pad,
        bytes_accessed=(zs.size + zd.size + w_fused.size) * itemsize
        + (b_fused.size + w_final.size + 1 + n_pad) * 4,
    )

    # NOTE: per-step VMEM footprint ~ 2 (dbl-buffer) * 2 inputs * tile_n*c_pad*itemsize
    # + 2*c_pad*c_pad*itemsize resident weights; tile_n=256 is comfortably inside
    # v7x's 32 MiB scoped default for moderate C. Shrink tile_n for very large C.
    out = pl.pallas_call(
        _link_predictor_kernel,
        out_shape=jax.ShapeDtypeStruct((num_tiles, 1, tile_n), jnp.float32),
        grid=(num_tiles,),
        in_specs=[
            pl.BlockSpec((tile_n, c_pad), lambda i: (i, 0)),        # z_src tile
            pl.BlockSpec((tile_n, c_pad), lambda i: (i, 0)),        # z_dst tile
            pl.BlockSpec((2 * c_pad, c_pad), lambda i: (0, 0)),     # fused W (VMEM-resident)
            pl.BlockSpec((1, c_pad), lambda i: (0, 0)),             # fused bias (resident)
            pl.BlockSpec((c_pad, 1), lambda i: (0, 0)),             # w_final (resident)
            pl.BlockSpec(memory_space=pltpu.MemorySpace.SMEM),      # b_final scalar
        ],
        out_specs=pl.BlockSpec((1, 1, tile_n), lambda i: (i, 0, 0)),  # lane-dense row
        compiler_params=pltpu.CompilerParams(
            dimension_semantics=("parallel",),                      # megacore on v7x
        ),
        cost_estimate=cost,
    )(zs, zd, w_fused, b_fused, w_final, b_final)

    return out.reshape(n_pad)[:n].reshape(n, 1)


def init_params(key, in_channels):
    """Deterministic init mimicking torch.nn.Linear (uniform +/- 1/sqrt(fan_in)).
    Weights are stored transposed to (in, out)."""
    ks = jax.random.split(key, 6)
    bound = 1.0 / jnp.sqrt(in_channels)

    def u(k, shape):
        return jax.random.uniform(k, shape, jnp.float32, -bound, bound)

    return {
        "w_src":   u(ks[0], (in_channels, in_channels)),
        "b_src":   u(ks[1], (1, in_channels)),
        "w_dst":   u(ks[2], (in_channels, in_channels)),
        "b_dst":   u(ks[3], (1, in_channels)),
        "w_final": u(ks[4], (in_channels, 1)),
        "b_final": u(ks[5], (1, 1)),
    }


def _reference(z_src, z_dst, p):
    h = z_src @ p["w_src"] + p["b_src"] + z_dst @ p["w_dst"] + p["b_dst"]
    h = jnp.maximum(h, 0.0)
    return jax.nn.sigmoid(h @ p["w_final"] + p["b_final"])


if __name__ == "__main__":
    N, C = 8, 32  # 8 candidate links, 32-dim node embeddings
    key = jax.random.PRNGKey(0)
    k_src, k_dst, k_param = jax.random.split(key, 3)

    z_src = jax.random.normal(k_src, (N, C), jnp.float32)
    z_dst = jax.random.normal(k_dst, (N, C), jnp.float32)
    params = init_params(k_param, C)

    ref = _reference(z_src, z_dst, params)

    # Exact f32-on-MXU path.
    out = jax.block_until_ready(link_predictor(z_src, z_dst, params))
    assert out.shape == (N, 1)
    assert jnp.allclose(out, ref, atol=1e-5, rtol=1e-5)

    # bf16-on-MXU fast path (v6e/v7x), f32 accumulate + f32 epilogue.
    out_bf16 = jax.block_until_ready(
        link_predictor(z_src, z_dst, params, compute_dtype=jnp.bfloat16))
    assert out_bf16.shape == (N, 1)
    assert jnp.allclose(out_bf16, ref, atol=3e-2, rtol=3e-2)

    print("KERNEL_OK")
</pallas_src>

<mosaic_0001>
module attributes {stable_mosaic.version = 11 : i64} {
  func.func @_link_predictor_kernel(%arg0: i32, %arg1: memref<256x128xf32, #tpu.memory_space<vmem>>, %arg2: memref<256x128xf32, #tpu.memory_space<vmem>>, %arg3: memref<256x128xf32, #tpu.memory_space<vmem>>, %arg4: memref<1x128xf32, #tpu.memory_space<vmem>>, %arg5: memref<128x1xf32, #tpu.memory_space<vmem>>, %arg6: memref<1x1xf32, #tpu.memory_space<smem>>, %arg7: memref<1x1x256xf32, #tpu.memory_space<vmem>>) attributes {dimension_semantics = [#tpu.dimension_semantics<parallel>], iteration_bounds = array<i64: 1>, scalar_prefetch = 0 : i64, scratch_operands = 0 : i64, tpu.core_type = #tpu.core_type<tc>, window_params = [{transform_indices = @transform_0, window_bounds = array<i64: 256, 128>}, {transform_indices = @transform_1, window_bounds = array<i64: 256, 128>}, {pipeline_mode = #tpu.pipeline_mode<synchronous>, transform_indices = @transform_2, window_bounds = array<i64: 256, 128>}, {pipeline_mode = #tpu.pipeline_mode<synchronous>, transform_indices = @transform_3, window_bounds = array<i64: 1, 128>}, {pipeline_mode = #tpu.pipeline_mode<synchronous>, transform_indices = @transform_4, window_bounds = array<i64: 128, 1>}, {transform_indices = @transform_5, window_bounds = array<i64: 1, 1>}, {transform_indices = @transform_6, window_bounds = array<i64: 1, 1, 256>}]} {
    %c0 = arith.constant 0 : index
    %c0_0 = arith.constant 0 : index
    %0 = vector.load %arg1[%c0, %c0_0] : memref<256x128xf32, #tpu.memory_space<vmem>>, vector<256x128xf32>
    %c0_1 = arith.constant 0 : index
    %c0_2 = arith.constant 0 : index
    %1 = vector.load %arg2[%c0_1, %c0_2] : memref<256x128xf32, #tpu.memory_space<vmem>>, vector<256x128xf32>
    %2 = tpu.concatenate %0, %1 in 1 : vector<256x128xf32>, vector<256x128xf32> -> vector<256x256xf32>
    %c0_3 = arith.constant 0 : index
    %c0_4 = arith.constant 0 : index
    %3 = vector.load %arg3[%c0_3, %c0_4] : memref<256x128xf32, #tpu.memory_space<vmem>>, vector<256x128xf32>
    %cst = arith.constant dense<0.000000e+00> : vector<256x128xf32>
    %4 = tpu.matmul %2, %3, %cst {dimension_numbers = #tpu.dot_dimension_numbers<[1], [0], [0], [1], [0, 0, 1, 1], [], []>} : vector<256x256xf32>, vector<256x128xf32>, vector<256x128xf32> -> vector<256x128xf32>
    %c0_5 = arith.constant 0 : index
    %c0_6 = arith.constant 0 : index
    %5 = vector.load %arg4[%c0_5, %c0_6] : memref<1x128xf32, #tpu.memory_space<vmem>>, vector<1x128xf32>
    %6 = vector.broadcast %5 : vector<1x128xf32> to vector<256x128xf32>
    %7 = arith.addf %4, %6 : vector<256x128xf32>
    %cst_7 = arith.constant 0.000000e+00 : f32
    %8 = vector.broadcast %cst_7 : f32 to vector<256x128xf32>
    %9 = arith.maximumf %7, %8 : vector<256x128xf32>
    %10 = tpu.transpose %9, [1, 0] : vector<256x128xf32> -> vector<128x256xf32>
    %c0_8 = arith.constant 0 : index
    %c0_9 = arith.constant 0 : index
    %11 = vector.load %arg5[%c0_8, %c0_9] : memref<128x1xf32, #tpu.memory_space<vmem>>, vector<128x1xf32>
    %12 = vector.broadcast %11 : vector<128x1xf32> to vector<128x256xf32>
    %13 = arith.mulf %10, %12 : vector<128x256xf32>
    %cst_10 = arith.constant dense<0.000000e+00> : vector<256xf32>
    %14 = vector.multi_reduction <add>, %13, %cst_10 [0] : vector<128x256xf32> to vector<256xf32>
    %15 = vector.shape_cast %14 : vector<256xf32> to vector<1x256xf32>
    %c0_11 = arith.constant 0 : index
    %c0_12 = arith.constant 0 : index
    %16 = memref.load %arg6[%c0_11, %c0_12] : memref<1x1xf32, #tpu.memory_space<smem>>
    %17 = vector.broadcast %16 : f32 to vector<1x256xf32>
    %18 = arith.addf %15, %17 : vector<1x256xf32>
    %19 = arith.negf %18 : vector<1x256xf32>
    %20 = math.exp %19 : vector<1x256xf32>
    %cst_13 = arith.constant 1.000000e+00 : f32
    %21 = vector.broadcast %cst_13 : f32 to vector<1x256xf32>
    %22 = arith.addf %21, %20 : vector<1x256xf32>
    %23 = arith.divf %21, %22 : vector<1x256xf32>
    %24 = vector.shape_cast %23 : vector<1x256xf32> to vector<1x1x256xf32>
    %c0_14 = arith.constant 0 : index
    %c0_15 = arith.constant 0 : index
    %c0_16 = arith.constant 0 : index
    %25 = vector.load %arg7[%c0_14, %c0_15, %c0_16] : memref<1x1x256xf32, #tpu.memory_space<vmem>>, vector<1x1x256xf32>
    tpu.vector_store %arg7[%c0_14, %c0_15, %c0_16], %24 {strides = array<i32>} : memref<1x1x256xf32, #tpu.memory_space<vmem>>, vector<1x1x256xf32>,
    return
  }
  func.func @transform_0(%arg0: i32) -> (i32, i32) {
    %c0_i32 = arith.constant 0 : i32
    %c0_i32_0 = arith.constant 0 : i32
    return %arg0, %c0_i32 : i32, i32
  }
  func.func @transform_1(%arg0: i32) -> (i32, i32) {
    %c0_i32 = arith.constant 0 : i32
    %c0_i32_0 = arith.constant 0 : i32
    return %arg0, %c0_i32 : i32, i32
  }
  func.func @transform_2(%arg0: i32) -> (i32, i32) {
    %c0_i32 = arith.constant 0 : i32
    %c0_i32_0 = arith.constant 0 : i32
    %c0_i32_1 = arith.constant 0 : i32
    return %c0_i32, %c0_i32_0 : i32, i32
  }
  func.func @transform_3(%arg0: i32) -> (i32, i32) {
    %c0_i32 = arith.constant 0 : i32
    %c0_i32_0 = arith.constant 0 : i32
    %c0_i32_1 = arith.constant 0 : i32
    return %c0_i32, %c0_i32_0 : i32, i32
  }
  func.func @transform_4(%arg0: i32) -> (i32, i32) {
    %c0_i32 = arith.constant 0 : i32
    %c0_i32_0 = arith.constant 0 : i32
    %c0_i32_1 = arith.constant 0 : i32
    return %c0_i32, %c0_i32_0 : i32, i32
  }
  func.func @transform_5(%arg0: i32) -> (i32, i32) {
    %c0_i32 = arith.constant 0 : i32
    %c0_i32_0 = arith.constant 0 : i32
    %c0_i32_1 = arith.constant 0 : i32
    return %c0_i32, %c0_i32_0 : i32, i32
  }
  func.func @transform_6(%arg0: i32) -> (i32, i32, i32) {
    %c0_i32 = arith.constant 0 : i32
    %c0_i32_0 = arith.constant 0 : i32
    %c0_i32_1 = arith.constant 0 : i32
    return %arg0, %c0_i32, %c0_i32_0 : i32, i32, i32
  }
}

</mosaic_0001>

<llo_original>
// kernel: tpu_custom_call.1
$region0: #{tpu_custom_call.1}
  #allocation0 [shape = 'u32[]', space=smem, size = 0x4, offset = 0x4, fixed_abs, tag = 'smem constant byte address 0x4 - core index']
  #allocation1 [shape = 'u32[144,128]{1,0:T(1,128)}', space=vmem, size = 0x12000, scoped, tag = 'internal scratch']
  #allocation2 [shape = 'f32[1,1]{1,0:T(1,128)S(6)}', space=smem, size = 0x200, scoped, tag = 'scoped memory for tpu_custom_call.1']
  %s0 = inlined_call_operand.hbm [shape: f32[256,128], index: 0, kind: input, shape index: {}]
  %s1 = inlined_call_operand.hbm [shape: f32[256,128], index: 1, kind: input, shape index: {}]
  %s2 = inlined_call_operand.hbm [shape: f32[256,128], index: 2, kind: input, shape index: {}]
  %s3 = inlined_call_operand.vmem [shape: f32[1,128], index: 3, kind: input, shape index: {}]
  %s4 = inlined_call_operand.vmem [shape: f32[128,1], index: 4, kind: input, shape index: {}]
  %s5 = inlined_call_operand.<no memory space> [shape: f32[1,1], index: 5, kind: input, shape index: {}]
  %s6 = inlined_call_operand.hbm [shape: f32[1,1,256], index: 6, kind: output, shape index: {}]
  %s7 = sld [smem:[#allocation0]]
  $region46: #{tpu_custom_call.1} parent=0
    _
  %s9 = ssub.s32 1, %s7
  %s10 = scalar_select 0, %s9, %s7
  %11 = sst [smem:[#allocation2]] %s5
  $region1: #{tpu_custom_call.1} parent=0
    #allocation3 [shape = 'u8[131072]{0}', space=vmem, size = 0x20000, scoped, tag = 'input window, operand 0, single buffered']
    #allocation4 [shape = 's32[1]{0}', space=sflag, size = 0x4, scoped, tag = 'scoped memory for tpu_custom_call.1']
    #allocation5 [shape = 's32[1]{0}', space=sflag, size = 0x4, scoped, tag = 'scoped memory for tpu_custom_call.1']
    #allocation6 [shape = 'u8[131072]{0}', space=vmem, size = 0x20000, scoped, tag = 'input window, operand 1, single buffered']
    #allocation7 [shape = 's32[1]{0}', space=sflag, size = 0x4, scoped, tag = 'scoped memory for tpu_custom_call.1']
    #allocation8 [shape = 'u8[131072]{0}', space=vmem, size = 0x20000, scoped, tag = 'input window, operand 2, single buffered']
    #allocation9 [shape = 'u8[1024]{0}', space=vmem, size = 0x400, scoped, tag = 'output window, operand 0, single buffered']
    %12 = vsyncpa [#allocation4], 0
    %13 = vsyncpa [#allocation7], 0
    %14 = vsyncpa [#allocation5], 0
    // Predicated region
    $region2: #{tpu_custom_call.1} parent=1 // pred_check
      _
    $region3: #{tpu_custom_call.1} parent=1 // pred_check_branch
      %16 = sbr.rel (0) target = $region5
    $region4: #{tpu_custom_call.1} parent=1 // pred_region
      %s18 = ssub.s32 4096, 4096
      %19 = vsyncadd [#allocation4], %s18
      %s20 = sshll.u32 [#allocation3], 4
      %s21 = int_to_ptr.vmem [resolvable:$true] %s20
      %26 = dma.hbm_to_vmem [thread:$0]  %s0, 4096, %s21, [#allocation4], 128, 128, 8
    $region5: #{tpu_custom_call.1} parent=1 // pred_fallthru
      _
    // Predicated region
    $region6: #{tpu_custom_call.1} parent=1 // pred_check
      _
    $region7: #{tpu_custom_call.1} parent=1 // pred_check_branch
      %28 = sbr.rel (0) target = $region9
    $region8: #{tpu_custom_call.1} parent=1 // pred_region
      %s30 = ssub.s32 4096, 4096
      %31 = vsyncadd [#allocation7], %s30
      %s32 = sshll.u32 [#allocation6], 4
      %s33 = int_to_ptr.vmem [resolvable:$true] %s32
      %38 = dma.hbm_to_vmem [thread:$0]  %s1, 4096, %s33, [#allocation7], 128, 128, 8
    $region9: #{tpu_custom_call.1} parent=1 // pred_fallthru
      _
    // Predicated region
    $region10: #{tpu_custom_call.1} parent=1 // pred_check
      _
    $region11: #{tpu_custom_call.1} parent=1 // pred_check_branch
      %40 = sbr.rel (0) target = $region13
    $region12: #{tpu_custom_call.1} parent=1 // pred_region
      %s42 = ssub.s32 4096, 4096
      %43 = vsyncadd [#allocation7], %s42
      %s44 = sshll.u32 [#allocation8], 4
      %s45 = int_to_ptr.vmem [resolvable:$true] %s44
      %50 = dma.hbm_to_vmem [thread:$0]  %s2, 4096, %s45, [#allocation7], 128, 128, 8
    $region13: #{tpu_custom_call.1} parent=1 // pred_fallthru
      _
    // Predicated region
    $region14: #{tpu_custom_call.1} parent=1 // pred_check
      _
    $region15: #{tpu_custom_call.1} parent=1 // pred_check_branch
      %52 = sbr.rel (0) target = $region17
    $region16: #{tpu_custom_call.1} parent=1 // pred_region
      _
    $region17: #{tpu_custom_call.1} parent=1 // pred_fallthru
      _
    // Predicated region
    $region18: #{tpu_custom_call.1} parent=1 // pred_check
      _
    $region19: #{tpu_custom_call.1} parent=1 // pred_check_branch
      %54 = sbr.rel (0) target = $region21
    $region20: #{tpu_custom_call.1} parent=1 // pred_region
      _
    $region21: #{tpu_custom_call.1} parent=1 // pred_fallthru
      _
    // Predicated region
    $region22: #{tpu_custom_call.1} parent=1 // pred_check
      _
    $region23: #{tpu_custom_call.1} parent=1 // pred_check_branch
      %56 = sbr.rel (0) target = $region25
    $region24: #{tpu_custom_call.1} parent=1 // pred_region
      _
    $region25: #{tpu_custom_call.1} parent=1 // pred_fallthru
      _
    // Predicated region
    $region26: #{tpu_custom_call.1} parent=1 // pred_check
      _
    $region27: #{tpu_custom_call.1} parent=1 // pred_check_branch
      %58 = sbr.rel (0) target = $region29
    $region28: #{tpu_custom_call.1} parent=1 // pred_region
      %59 = dma.done [#allocation4], 4096
    $region29: #{tpu_custom_call.1} parent=1 // pred_fallthru
      _
    // Predicated region
    $region30: #{tpu_custom_call.1} parent=1 // pred_check
      _
    $region31: #{tpu_custom_call.1} parent=1 // pred_check_branch
      %61 = sbr.rel (0) target = $region33
    $region32: #{tpu_custom_call.1} parent=1 // pred_region
      %62 = dma.done [#allocation7], 4096
    $region33: #{tpu_custom_call.1} parent=1 // pred_fallthru
      _
    // Predicated region
    $region34: #{tpu_custom_call.1} parent=1 // pred_check
      _
    $region35: #{tpu_custom_call.1} parent=1 // pred_check_branch
      %64 = sbr.rel (0) target = $region37
    $region36: #{tpu_custom_call.1} parent=1 // pred_region
      %65 = dma.done [#allocation7], 4096
    $region37: #{tpu_custom_call.1} parent=1 // pred_fallthru
      _
    %v66 = vld [vmem:[#allocation3] sm:$0xff]
    %v67 = vld [vmem:[#allocation3 + $0x8] sm:$0xff]
    %v68 = vld [vmem:[#allocation3 + $0x10] sm:$0xff]
    %v69 = vld [vmem:[#allocation3 + $0x18] sm:$0xff]
    %v70 = vld [vmem:[#allocation3 + $0x20] sm:$0xff]
    %v71 = vld [vmem:[#allocation3 + $0x28] sm:$0xff]
    %v72 = vld [vmem:[#allocation3 + $0x30] sm:$0xff]
    %v73 = vld [vmem:[#allocation3 + $0x38] sm:$0xff]
    %v74 = vld [vmem:[#allocation3 + $0x40] sm:$0xff]
    %v75 = vld [vmem:[#allocation3 + $0x48] sm:$0xff]
    %v76 = vld [vmem:[#allocation3 + $0x50] sm:$0xff]
    %v77 = vld [vmem:[#allocation3 + $0x58] sm:$0xff]
    %v78 = vld [vmem:[#allocation3 + $0x60] sm:$0xff]
    %v79 = vld [vmem:[#allocation3 + $0x68] sm:$0xff]
    %v80 = vld [vmem:[#allocation3 + $0x70] sm:$0xff]
    %v81 = vld [vmem:[#allocation3 + $0x78] sm:$0xff]
    %v82 = vld [vmem:[#allocation3 + $0x80] sm:$0xff]
    %v83 = vld [vmem:[#allocation3 + $0x88] sm:$0xff]
    %v84 = vld [vmem:[#allocation3 + $0x90] sm:$0xff]
    %v85 = vld [vmem:[#allocation3 + $0x98] sm:$0xff]
    %v86 = vld [vmem:[#allocation3 + $0xa0] sm:$0xff]
    %v87 = vld [vmem:[#allocation3 + $0xa8] sm:$0xff]
    %v88 = vld [vmem:[#allocation3 + $0xb0] sm:$0xff]
    %v89 = vld [vmem:[#allocation3 + $0xb8] sm:$0xff]
    %v90 = vld [vmem:[#allocation3 + $0xc0] sm:$0xff]
    %v91 = vld [vmem:[#allocation3 + $0xc8] sm:$0xff]
    %v92 = vld [vmem:[#allocation3 + $0xd0] sm:$0xff]
    %v93 = vld [vmem:[#allocation3 + $0xd8] sm:$0xff]
    %v94 = vld [vmem:[#allocation3 + $0xe0] sm:$0xff]
    %v95 = vld [vmem:[#allocation3 + $0xe8] sm:$0xff]
    %v96 = vld [vmem:[#allocation3 + $0xf0] sm:$0xff]
    %v97 = vld [vmem:[#allocation3 + $0xf8] sm:$0xff]
    %v98 = vld [vmem:[#allocation6] sm:$0xff]
    %v99 = vld [vmem:[#allocation6 + $0x8] sm:$0xff]
    %v100 = vld [vmem:[#allocation6 + $0x10] sm:$0xff]
    %v101 = vld [vmem:[#allocation6 + $0x18] sm:$0xff]
    %v102 = vld [vmem:[#allocation6 + $0x20] sm:$0xff]
    %v103 = vld [vmem:[#allocation6 + $0x28] sm:$0xff]
    %v104 = vld [vmem:[#allocation6 + $0x30] sm:$0xff]
    %v105 = vld [vmem:[#allocation6 + $0x38] sm:$0xff]
    %v106 = vld [vmem:[#allocation6 + $0x40] sm:$0xff]
    %v107 = vld [vmem:[#allocation6 + $0x48] sm:$0xff]
    %v108 = vld [vmem:[#allocation6 + $0x50] sm:$0xff]
    %v109 = vld [vmem:[#allocation6 + $0x58] sm:$0xff]
    %v110 = vld [vmem:[#allocation6 + $0x60] sm:$0xff]
    %v111 = vld [vmem:[#allocation6 + $0x68] sm:$0xff]
    %v112 = vld [vmem:[#allocation6 + $0x70] sm:$0xff]
    %v113 = vld [vmem:[#allocation6 + $0x78] sm:$0xff]
    %v114 = vld [vmem:[#allocation6 + $0x80] sm:$0xff]
    %v115 = vld [vmem:[#allocation6 + $0x88] sm:$0xff]
    %v116 = vld [vmem:[#allocation6 + $0x90] sm:$0xff]
    %v117 = vld [vmem:[#allocation6 + $0x98] sm:$0xff]
    %v118 = vld [vmem:[#allocation6 + $0xa0] sm:$0xff]
    %v119 = vld [vmem:[#allocation6 + $0xa8] sm:$0xff]
    %v120 = vld [vmem:[#allocation6 + $0xb0] sm:$0xff]
    %v121 = vld [vmem:[#allocation6 + $0xb8] sm:$0xff]
    %v122 = vld [vmem:[#allocation6 + $0xc0] sm:$0xff]
    %v123 = vld [vmem:[#allocation6 + $0xc8] sm:$0xff]
    %v124 = vld [vmem:[#allocation6 + $0xd0] sm:$0xff]
    %v125 = vld [vmem:[#allocation6 + $0xd8] sm:$0xff]
    %v126 = vld [vmem:[#allocation6 + $0xe0] sm:$0xff]
    %v127 = vld [vmem:[#allocation6 + $0xe8] sm:$0xff]
    %v128 = vld [vmem:[#allocation6 + $0xf0] sm:$0xff]
    %v129 = vld [vmem:[#allocation6 + $0xf8] sm:$0xff]
    %v130 = vld [vmem:[#allocation8] sm:$0xff]
    %v131 = vld [vmem:[#allocation8 + $0x8] sm:$0xff]
    %v132 = vld [vmem:[#allocation8 + $0x10] sm:$0xff]
    %v133 = vld [vmem:[#allocation8 + $0x18] sm:$0xff]
    %v134 = vld [vmem:[#allocation8 + $0x20] sm:$0xff]
    %v135 = vld [vmem:[#allocation8 + $0x28] sm:$0xff]
    %v136 = vld [vmem:[#allocation8 + $0x30] sm:$0xff]
    %v137 = vld [vmem:[#allocation8 + $0x38] sm:$0xff]
    %v138 = vld [vmem:[#allocation8 + $0x40] sm:$0xff]
    %v139 = vld [vmem:[#allocation8 + $0x48] sm:$0xff]
    %v140 = vld [vmem:[#allocation8 + $0x50] sm:$0xff]
    %v141 = vld [vmem:[#allocation8 + $0x58] sm:$0xff]
    %v142 = vld [vmem:[#allocation8 + $0x60] sm:$0xff]
    %v143 = vld [vmem:[#allocation8 + $0x68] sm:$0xff]
    %v144 = vld [vmem:[#allocation8 + $0x70] sm:$0xff]
    %v145 = vld [vmem:[#allocation8 + $0x78] sm:$0xff]
    %v146 = vld [vmem:[#allocation8 + $0x80] sm:$0xff]
    %v147 = vld [vmem:[#allocation8 + $0x88] sm:$0xff]
    %v148 = vld [vmem:[#allocation8 + $0x90] sm:$0xff]
    %v149 = vld [vmem:[#allocation8 + $0x98] sm:$0xff]
    %v150 = vld [vmem:[#allocation8 + $0xa0] sm:$0xff]
    %v151 = vld [vmem:[#allocation8 + $0xa8] sm:$0xff]
    %v152 = vld [vmem:[#allocation8 + $0xb0] sm:$0xff]
    %v153 = vld [vmem:[#allocation8 + $0xb8] sm:$0xff]
    %v154 = vld [vmem:[#allocation8 + $0xc0] sm:$0xff]
    %v155 = vld [vmem:[#allocation8 + $0xc8] sm:$0xff]
    %v156 = vld [vmem:[#allocation8 + $0xd0] sm:$0xff]
    %v157 = vld [vmem:[#allocation8 + $0xd8] sm:$0xff]
    %v158 = vld [vmem:[#allocation8 + $0xe0] sm:$0xff]
    %v159 = vld [vmem:[#allocation8 + $0xe8] sm:$0xff]
    %v160 = vld [vmem:[#allocation8 + $0xf0] sm:$0xff]
    %v161 = vld [vmem:[#allocation8 + $0xf8] sm:$0xff]
    %v162 = vld [vmem:[%s3] sm:$0x1]
    %v164 = vlaneseq
    %v165 = vshrl.u32 %v164, 7
    %v166 = vsub.s32 0, %v165
    %v167 = vrot.slane %v162, %v166
    %169 = vmatprep.subr.mxu0 0.0
    %170 = vmatpush1.msra.mxu0 %v130
    %171 = vmatprep.subr.mxu0 0.0
    %172 = vmatpush1.msra.mxu0 %v131
    %173 = vmatprep.subr.mxu0 0.0
    %174 = vmatpush1.msra.mxu0 %v132
    %175 = vmatprep.subr.mxu0 0.0
    %176 = vmatpush1.msra.mxu0 %v133
    %177 = vmatprep.subr.mxu0 0.0
    %178 = vmatpush1.msra.mxu0 %v134
    %179 = vmatprep.subr.mxu0 0.0
    %180 = vmatpush1.msra.mxu0 %v135
    %181 = vmatprep.subr.mxu0 0.0
    %182 = vmatpush1.msra.mxu0 %v136
    %183 = vmatprep.subr.mxu0 0.0
    %184 = vmatpush1.msra.mxu0 %v137
    %185 = vmatprep.subr.mxu0 0.0
    %186 = vmatpush1.msra.mxu0 %v138
    %187 = vmatprep.subr.mxu0 0.0
    %188 = vmatpush1.msra.mxu0 %v139
    %189 = vmatprep.subr.mxu0 0.0
    %190 = vmatpush1.msra.mxu0 %v140
    %191 = vmatprep.subr.mxu0 0.0
    %192 = vmatpush1.msra.mxu0 %v141
    %193 = vmatprep.subr.mxu0 0.0
    %194 = vmatpush1.msra.mxu0 %v142
    %195 = vmatprep.subr.mxu0 0.0
    %196 = vmatpush1.msra.mxu0 %v143
    %197 = vmatprep.subr.mxu0 0.0
    %198 = vmatpush1.msra.mxu0 %v144
    %199 = vmatprep.subr.mxu0 0.0
    %200 = vmatpush1.msra.mxu0 %v145
    %201 = vmatprep.subr.mxu0 0.0
    %202 = vmatpush1.msra.mxu0 %v146
    %203 = vmatprep.subr.mxu0 0.0
    %204 = vmatpush1.msra.mxu0 %v147
    %205 = vmatprep.subr.mxu0 0.0
    %206 = vmatpush1.msra.mxu0 %v148
    %207 = vmatprep.subr.mxu0 0.0
    %208 = vmatpush1.msra.mxu0 %v149
    %209 = vmatprep.subr.mxu0 0.0
    %210 = vmatpush1.msra.mxu0 %v150
    %211 = vmatprep.subr.mxu0 0.0
    %212 = vmatpush1.msra.mxu0 %v151
    %213 = vmatprep.subr.mxu0 0.0
    %214 = vmatpush1.msra.mxu0 %v152
    %215 = vmatprep.subr.mxu0 0.0
    %216 = vmatpush1.msra.mxu0 %v153
    %217 = vmatprep.subr.mxu0 0.0
    %218 = vmatpush1.msra.mxu0 %v154
    %219 = vmatprep.subr.mxu0 0.0
    %220 = vmatpush1.msra.mxu0 %v155
    %221 = vmatprep.subr.mxu0 0.0
    %222 = vmatpush1.msra.mxu0 %v156
    %223 = vmatprep.subr.mxu0 0.0
    %224 = vmatpush1.msra.mxu0 %v157
    %225 = vmatprep.subr.mxu0 0.0
    %226 = vmatpush1.msra.mxu0 %v158
    %227 = vmatprep.subr.mxu0 0.0
    %228 = vmatpush1.msra.mxu0 %v159
    %229 = vmatprep.subr.mxu0 0.0
    %230 = vmatpush1.msra.mxu0 %v160
    %231 = vmatprep.subr.mxu0 0.0
    %232 = vmatpush1.msra.mxu0 %v161
    %233 = vmatprep.mubr.f32.mxu0 %v98
    %234 = vmatmul.mubr.f32.gmra.mrb[0].mxu0 %v66
    %v235 = vpop.f32.mrb[0].mxu0
    %v236 = vadd.f32 %v167, %v235
    %v237 = vpop.f32.mrb[0].mxu0
    %238 = vmatprep.mubr.f32.mxu0 %v99
    %239 = vmatmul.mubr.f32.gmra.mrb[0].mxu0 %v67
    %v240 = vpop.f32.mrb[0].mxu0
    %v241 = vadd.f32 %v167, %v240
    %v242 = vpop.f32.mrb[0].mxu0
    %243 = vmatprep.mubr.f32.mxu0 %v100
    %244 = vmatmul.mubr.f32.gmra.mrb[0].mxu0 %v68
    %v245 = vpop.f32.mrb[0].mxu0
    %v246 = vadd.f32 %v167, %v245
    %v247 = vpop.f32.mrb[0].mxu0
    %248 = vmatprep.mubr.f32.mxu0 %v101
    %249 = vmatmul.mubr.f32.gmra.mrb[0].mxu0 %v69
    %v250 = vpop.f32.mrb[0].mxu0
    %v251 = vadd.f32 %v167, %v250
    %v252 = vpop.f32.mrb[0].mxu0
    %253 = vmatprep.mubr.f32.mxu0 %v102
    %254 = vmatmul.mubr.f32.gmra.mrb[0].mxu0 %v70
    %v255 = vpop.f32.mrb[0].mxu0
    %v256 = vadd.f32 %v167, %v255
    %v257 = vpop.f32.mrb[0].mxu0
    %258 = vmatprep.mubr.f32.mxu0 %v103
    %259 = vmatmul.mubr.f32.gmra.mrb[0].mxu0 %v71
    %v260 = vpop.f32.mrb[0].mxu0
    %v261 = vadd.f32 %v167, %v260
    %v262 = vpop.f32.mrb[0].mxu0
    %263 = vmatprep.mubr.f32.mxu0 %v104
    %264 = vmatmul.mubr.f32.gmra.mrb[0].mxu0 %v72
    %v265 = vpop.f32.mrb[0].mxu0
    %v266 = vadd.f32 %v167, %v265
    %v267 = vpop.f32.mrb[0].mxu0
    %268 = vmatprep.mubr.f32.mxu0 %v105
    %269 = vmatmul.mubr.f32.gmra.mrb[0].mxu0 %v73
    %v270 = vpop.f32.mrb[0].mxu0
    %v271 = vadd.f32 %v167, %v270
    %v272 = vpop.f32.mrb[0].mxu0
    %273 = vmatprep.mubr.f32.mxu0 %v106
    %274 = vmatmul.mubr.f32.gmra.mrb[0].mxu0 %v74
    %v275 = vpop.f32.mrb[0].mxu0
    %v276 = vadd.f32 %v167, %v275
    %v277 = vpop.f32.mrb[0].mxu0
    %278 = vmatprep.mubr.f32.mxu0 %v107
    %279 = vmatmul.mubr.f32.gmra.mrb[0].mxu0 %v75
    %v280 = vpop.f32.mrb[0].mxu0
    %v281 = vadd.f32 %v167, %v280
    %v282 = vpop.f32.mrb[0].mxu0
    %283 = vmatprep.mubr.f32.mxu0 %v108
    %284 = vmatmul.mubr.f32.gmra.mrb[0].mxu0 %v76
    %v285 = vpop.f32.mrb[0].mxu0
    %v286 = vadd.f32 %v167, %v285
    %v287 = vpop.f32.mrb[0].mxu0
    %288 = vmatprep.mubr.f32.mxu0 %v109
    %289 = vmatmul.mubr.f32.gmra.mrb[0].mxu0 %v77
    %v290 = vpop.f32.mrb[0].mxu0
    %v291 = vadd.f32 %v167, %v290
    %v292 = vpop.f32.mrb[0].mxu0
    %293 = vmatprep.mubr.f32.mxu0 %v110
    %294 = vmatmul.mubr.f32.gmra.mrb[0].mxu0 %v78
    %v295 = vpop.f32.mrb[0].mxu0
    %v296 = vadd.f32 %v167, %v295
    %v297 = vpop.f32.mrb[0].mxu0
    %298 = vmatprep.mubr.f32.mxu0 %v111
    %299 = vmatmul.mubr.f32.gmra.mrb[0].mxu0 %v79
    %v300 = vpop.f32.mrb[0].mxu0
    %v301 = vadd.f32 %v167, %v300
    %v302 = vpop.f32.mrb[0].mxu0
    %303 = vmatprep.mubr.f32.mxu0 %v112
    %304 = vmatmul.mubr.f32.gmra.mrb[0].mxu0 %v80
    %v305 = vpop.f32.mrb[0].mxu0
    %v306 = vadd.f32 %v167, %v305
    %v307 = vpop.f32.mrb[0].mxu0
    %308 = vmatprep.mubr.f32.mxu0 %v113
    %309 = vmatmul.mubr.f32.gmra.mrb[0].mxu0 %v81
    %v310 = vpop.f32.mrb[0].mxu0
    %v311 = vadd.f32 %v167, %v310
    %v312 = vpop.f32.mrb[0].mxu0
    %313 = vmatprep.mubr.f32.mxu0 %v114
    %314 = vmatmul.mubr.f32.gmra.mrb[0].mxu0 %v82
    %v315 = vpop.f32.mrb[0].mxu0
    %v316 = vadd.f32 %v167, %v315
    %v317 = vpop.f32.mrb[0].mxu0
    %318 = vmatprep.mubr.f32.mxu0 %v115
    %319 = vmatmul.mubr.f32.gmra.mrb[0].mxu0 %v83
    %v320 = vpop.f32.mrb[0].mxu0
    %v321 = vadd.f32 %v167, %v320
    %v322 = vpop.f32.mrb[0].mxu0
    %323 = vmatprep.mubr.f32.mxu0 %v116
    %324 = vmatmul.mubr.f32.gmra.mrb[0].mxu0 %v84
    %v325 = vpop.f32.mrb[0].mxu0
    %v326 = vadd.f32 %v167, %v325
    %v327 = vpop.f32.mrb[0].mxu0
    %328 = vmatprep.mubr.f32.mxu0 %v117
    %329 = vmatmul.mubr.f32.gmra.mrb[0].mxu0 %v85
    %v330 = vpop.f32.mrb[0].mxu0
    %v331 = vadd.f32 %v167, %v330
    %v332 = vpop.f32.mrb[0].mxu0
    %333 = vmatprep.mubr.f32.mxu0 %v118
    %334 = vmatmul.mubr.f32.gmra.mrb[0].mxu0 %v86
    %v335 = vpop.f32.mrb[0].mxu0
    %v336 = vadd.f32 %v167, %v335
    %v337 = vpop.f32.mrb[0].mxu0
    %338 = vmatprep.mubr.f32.mxu0 %v119
    %339 = vmatmul.mubr.f32.gmra.mrb[0].mxu0 %v87
    %v340 = vpop.f32.mrb[0].mxu0
    %v341 = vadd.f32 %v167, %v340
    %v342 = vpop.f32.mrb[0].mxu0
    %343 = vmatprep.mubr.f32.mxu0 %v120
    %344 = vmatmul.mubr.f32.gmra.mrb[0].mxu0 %v88
    %v345 = vpop.f32.mrb[0].mxu0
    %v346 = vadd.f32 %v167, %v345
    %v347 = vpop.f32.mrb[0].mxu0
    %348 = vmatprep.mubr.f32.mxu0 %v121
    %349 = vmatmul.mubr.f32.gmra.mrb[0].mxu0 %v89
    %v350 = vpop.f32.mrb[0].mxu0
    %v351 = vadd.f32 %v167, %v350
    %v352 = vpop.f32.mrb[0].mxu0
    %353 = vmatprep.mubr.f32.mxu0 %v122
    %354 = vmatmul.mubr.f32.gmra.mrb[0].mxu0 %v90
    %v355 = vpop.f32.mrb[0].mxu0
    %v356 = vadd.f32 %v167, %v355
    %v357 = vpop.f32.mrb[0].mxu0
    %358 = vmatprep.mubr.f32.mxu0 %v123
    %359 = vmatmul.mubr.f32.gmra.mrb[0].mxu0 %v91
    %v360 = vpop.f32.mrb[0].mxu0
    %v361 = vadd.f32 %v167, %v360
    %v362 = vpop.f32.mrb[0].mxu0
    %363 = vmatprep.mubr.f32.mxu0 %v124
    %364 = vmatmul.mubr.f32.gmra.mrb[0].mxu0 %v92
    %v365 = vpop.f32.mrb[0].mxu0
    %v366 = vadd.f32 %v167, %v365
    %v367 = vpop.f32.mrb[0].mxu0
    %368 = vmatprep.mubr.f32.mxu0 %v125
    %369 = vmatmul.mubr.f32.gmra.mrb[0].mxu0 %v93
    %v370 = vpop.f32.mrb[0].mxu0
    %v371 = vadd.f32 %v167, %v370
    %v372 = vpop.f32.mrb[0].mxu0
    %373 = vmatprep.mubr.f32.mxu0 %v126
    %374 = vmatmul.mubr.f32.gmra.mrb[0].mxu0 %v94
    %v375 = vpop.f32.mrb[0].mxu0
    %v376 = vadd.f32 %v167, %v375
    %v377 = vpop.f32.mrb[0].mxu0
    %378 = vmatprep.mubr.f32.mxu0 %v127
    %379 = vmatmul.mubr.f32.gmra.mrb[0].mxu0 %v95
    %v380 = vpop.f32.mrb[0].mxu0
    %v381 = vadd.f32 %v167, %v380
    %v382 = vpop.f32.mrb[0].mxu0
    %383 = vmatprep.mubr.f32.mxu0 %v128
    %384 = vmatmul.mubr.f32.gmra.mrb[0].mxu0 %v96
    %v385 = vpop.f32.mrb[0].mxu0
    %v386 = vadd.f32 %v167, %v385
    %v387 = vpop.f32.mrb[0].mxu0
    %388 = vmatprep.mubr.f32.mxu0 %v129
    %389 = vmatmul.mubr.f32.gmra.mrb[0].mxu0 %v97
    %v390 = vpop.f32.mrb[0].mxu0
    %v391 = vadd.f32 %v167, %v390
    %v392 = vpop.f32.mrb[0].mxu0
    %393 = vdwg.mxu0
    %v394 = vmax.f32 %v236, 0.0
    %v395 = vmax.f32 %v241, 0.0
    %v396 = vmax.f32 %v246, 0.0
    %v397 = vmax.f32 %v251, 0.0
    %v398 = vmax.f32 %v256, 0.0
    %v399 = vmax.f32 %v261, 0.0
    %v400 = vmax.f32 %v266, 0.0
    %v401 = vmax.f32 %v271, 0.0
    %v402 = vmax.f32 %v276, 0.0
    %v403 = vmax.f32 %v281, 0.0
    %v404 = vmax.f32 %v286, 0.0
    %v405 = vmax.f32 %v291, 0.0
    %v406 = vmax.f32 %v296, 0.0
    %v407 = vmax.f32 %v301, 0.0
    %v408 = vmax.f32 %v306, 0.0
    %v409 = vmax.f32 %v311, 0.0
    %v410 = vmax.f32 %v316, 0.0
    %v411 = vmax.f32 %v321, 0.0
    %v412 = vmax.f32 %v326, 0.0
    %v413 = vmax.f32 %v331, 0.0
    %v414 = vmax.f32 %v336, 0.0
    %v415 = vmax.f32 %v341, 0.0
    %v416 = vmax.f32 %v346, 0.0
    %v417 = vmax.f32 %v351, 0.0
    %v418 = vmax.f32 %v356, 0.0
    %v419 = vmax.f32 %v361, 0.0
    %v420 = vmax.f32 %v366, 0.0
    %v421 = vmax.f32 %v371, 0.0
    %v422 = vmax.f32 %v376, 0.0
    %v423 = vmax.f32 %v381, 0.0
    %v424 = vmax.f32 %v386, 0.0
    %v425 = vmax.f32 %v391, 0.0
    %426 = vxpose.xlu0.b32.start [1/16] %v394, 128
    %427 = vxpose.xlu0.b32.cont [2/16] %v395, 128
    %428 = vxpose.xlu0.b32.cont [3/16] %v396, 128
    %429 = vxpose.xlu0.b32.cont [4/16] %v397, 128
    %430 = vxpose.xlu0.b32.cont [5/16] %v398, 128
    %431 = vxpose.xlu0.b32.cont [6/16] %v399, 128
    %432 = vxpose.xlu0.b32.cont [7/16] %v400, 128
    %433 = vxpose.xlu0.b32.cont [8/16] %v401, 128
    %434 = vxpose.xlu0.b32.cont [9/16] %v402, 128
    %435 = vxpose.xlu0.b32.cont [10/16] %v403, 128
    %436 = vxpose.xlu0.b32.cont [11/16] %v404, 128
    %437 = vxpose.xlu0.b32.cont [12/16] %v405, 128
    %438 = vxpose.xlu0.b32.cont [13/16] %v406, 128
    %439 = vxpose.xlu0.b32.cont [14/16] %v407, 128
    %440 = vxpose.xlu0.b32.cont [15/16] %v408, 128
    %441 = vxpose.xlu0.b32.end [16/16] %v409, 128
    %v442 = vpop.trf.xlu0
    %v443 = vpop.trf.xlu0
    %v444 = vpop.trf.xlu0
    %v445 = vpop.trf.xlu0
    %v446 = vpop.trf.xlu0
    %v447 = vpop.trf.xlu0
    %v448 = vpop.trf.xlu0
    %v449 = vpop.trf.xlu0
    %v450 = vpop.trf.xlu0
    %v451 = vpop.trf.xlu0
    %v452 = vpop.trf.xlu0
    %v453 = vpop.trf.xlu0
    %v454 = vpop.trf.xlu0
    %v455 = vpop.trf.xlu0
    %v456 = vpop.trf.xlu0
    %v457 = vpop.trf.xlu0
    %458 = vxpose.xlu0.b32.start [1/16] %v410, 128
    %459 = vxpose.xlu0.b32.cont [2/16] %v411, 128
    %460 = vxpose.xlu0.b32.cont [3/16] %v412, 128
    %461 = vxpose.xlu0.b32.cont [4/16] %v413, 128
    %462 = vxpose.xlu0.b32.cont [5/16] %v414, 128
    %463 = vxpose.xlu0.b32.cont [6/16] %v415, 128
    %464 = vxpose.xlu0.b32.cont [7/16] %v416, 128
    %465 = vxpose.xlu0.b32.cont [8/16] %v417, 128
    %466 = vxpose.xlu0.b32.cont [9/16] %v418, 128
    %467 = vxpose.xlu0.b32.cont [10/16] %v419, 128
    %468 = vxpose.xlu0.b32.cont [11/16] %v420, 128
    %469 = vxpose.xlu0.b32.cont [12/16] %v421, 128
    %470 = vxpose.xlu0.b32.cont [13/16] %v422, 128
    %471 = vxpose.xlu0.b32.cont [14/16] %v423, 128
    %472 = vxpose.xlu0.b32.cont [15/16] %v424, 128
    %473 = vxpose.xlu0.b32.end [16/16] %v425, 128
    %v474 = vpop.trf.xlu0
    %v475 = vpop.trf.xlu0
    %v476 = vpop.trf.xlu0
    %v477 = vpop.trf.xlu0
    %v478 = vpop.trf.xlu0
    %v479 = vpop.trf.xlu0
    %v480 = vpop.trf.xlu0
    %v481 = vpop.trf.xlu0
    %v482 = vpop.trf.xlu0
    %v483 = vpop.trf.xlu0
    %v484 = vpop.trf.xlu0
    %v485 = vpop.trf.xlu0
    %v486 = vpop.trf.xlu0
    %v487 = vpop.trf.xlu0
    %v488 = vpop.trf.xlu0
    %v489 = vpop.trf.xlu0
    %v490 = vld [vmem:[%s4] sm:$0xff]
    %v491 = vld [vmem:[%s4 + $0x8] sm:$0xff]
    %v492 = vld [vmem:[%s4 + $0x10] sm:$0xff]
    %v493 = vld [vmem:[%s4 + $0x18] sm:$0xff]
    %v494 = vld [vmem:[%s4 + $0x20] sm:$0xff]
    %v495 = vld [vmem:[%s4 + $0x28] sm:$0xff]
    %v496 = vld [vmem:[%s4 + $0x30] sm:$0xff]
    %v497 = vld [vmem:[%s4 + $0x38] sm:$0xff]
    %v498 = vld [vmem:[%s4 + $0x40] sm:$0xff]
    %v499 = vld [vmem:[%s4 + $0x48] sm:$0xff]
    %v500 = vld [vmem:[%s4 + $0x50] sm:$0xff]
    %v501 = vld [vmem:[%s4 + $0x58] sm:$0xff]
    %v502 = vld [vmem:[%s4 + $0x60] sm:$0xff]
    %v503 = vld [vmem:[%s4 + $0x68] sm:$0xff]
    %v504 = vld [vmem:[%s4 + $0x70] sm:$0xff]
    %v505 = vld [vmem:[%s4 + $0x78] sm:$0xff]
    %507 = vset.pattern.permute.xlu0 0
    %508 = vperm.xlu0 %507, %v490
    %v509 = vpop.permute.xlu0 %508
    %512 = vset.pattern.permute.xlu0 0
    %513 = vperm.xlu0 %512, %v491
    %v514 = vpop.permute.xlu0 %513
    %517 = vset.pattern.permute.xlu0 0
    %518 = vperm.xlu0 %517, %v492
    %v519 = vpop.permute.xlu0 %518
    %522 = vset.pattern.permute.xlu0 0
    %523 = vperm.xlu0 %522, %v493
    %v524 = vpop.permute.xlu0 %523
    %527 = vset.pattern.permute.xlu0 0
    %528 = vperm.xlu0 %527, %v494
    %v529 = vpop.permute.xlu0 %528
    %532 = vset.pattern.permute.xlu0 0
    %533 = vperm.xlu0 %532, %v495
    %v534 = vpop.permute.xlu0 %533
    %537 = vset.pattern.permute.xlu0 0
    %538 = vperm.xlu0 %537, %v496
    %v539 = vpop.permute.xlu0 %538
    %542 = vset.pattern.permute.xlu0 0
    %543 = vperm.xlu0 %542, %v497
    %v544 = vpop.permute.xlu0 %543
    %547 = vset.pattern.permute.xlu0 0
    %548 = vperm.xlu0 %547, %v498
    %v549 = vpop.permute.xlu0 %548
    %552 = vset.pattern.permute.xlu0 0
    %553 = vperm.xlu0 %552, %v499
    %v554 = vpop.permute.xlu0 %553
    %557 = vset.pattern.permute.xlu0 0
    %558 = vperm.xlu0 %557, %v500
    %v559 = vpop.permute.xlu0 %558
    %562 = vset.pattern.permute.xlu0 0
    %563 = vperm.xlu0 %562, %v501
    %v564 = vpop.permute.xlu0 %563
    %567 = vset.pattern.permute.xlu0 0
    %568 = vperm.xlu0 %567, %v502
    %v569 = vpop.permute.xlu0 %568
    %572 = vset.pattern.permute.xlu0 0
    %573 = vperm.xlu0 %572, %v503
    %v574 = vpop.permute.xlu0 %573
    %577 = vset.pattern.permute.xlu0 0
    %578 = vperm.xlu0 %577, %v504
    %v579 = vpop.permute.xlu0 %578
    %582 = vset.pattern.permute.xlu0 0
    %583 = vperm.xlu0 %582, %v505
    %v584 = vpop.permute.xlu0 %583
    %v586 = vmul.f32 %v442, %v509
    %v587 = vmul.f32 %v474, %v509
    %v588 = vmul.f32 %v443, %v514
    %v589 = vmul.f32 %v475, %v514
    %v590 = vmul.f32 %v444, %v519
    %v591 = vmul.f32 %v476, %v519
    %v592 = vmul.f32 %v445, %v524
    %v593 = vmul.f32 %v477, %v524
    %v594 = vmul.f32 %v446, %v529
    %v595 = vmul.f32 %v478, %v529
    %v596 = vmul.f32 %v447, %v534
    %v597 = vmul.f32 %v479, %v534
    %v598 = vmul.f32 %v448, %v539
    %v599 = vmul.f32 %v480, %v539
    %v600 = vmul.f32 %v449, %v544
    %v601 = vmul.f32 %v481, %v544
    %v602 = vmul.f32 %v450, %v549
    %v603 = vmul.f32 %v482, %v549
    %v604 = vmul.f32 %v451, %v554
    %v605 = vmul.f32 %v483, %v554
    %v606 = vmul.f32 %v452, %v559
    %v607 = vmul.f32 %v484, %v559
    %v608 = vmul.f32 %v453, %v564
    %v609 = vmul.f32 %v485, %v564
    %v610 = vmul.f32 %v454, %v569
    %v611 = vmul.f32 %v486, %v569
    %v612 = vmul.f32 %v455, %v574
    %v613 = vmul.f32 %v487, %v574
    %v614 = vmul.f32 %v456, %v579
    %v615 = vmul.f32 %v488, %v579
    %v616 = vmul.f32 %v457, %v584
    %v617 = vmul.f32 %v489, %v584
    %v618 = vadd.f32 %v586, %v588
    %v619 = vadd.f32 %v618, %v590
    %v620 = vadd.f32 %v619, %v592
    %v621 = vadd.f32 %v620, %v594
    %v622 = vadd.f32 %v621, %v596
    %v623 = vadd.f32 %v622, %v598
    %v624 = vadd.f32 %v623, %v600
    %v625 = vadd.f32 %v624, %v602
    %v626 = vadd.f32 %v625, %v604
    %v627 = vadd.f32 %v626, %v606
    %v628 = vadd.f32 %v627, %v608
    %v629 = vadd.f32 %v628, %v610
    %v630 = vadd.f32 %v629, %v612
    %v631 = vadd.f32 %v630, %v614
    %v632 = vadd.f32 %v631, %v616
    %v633 = vrot.slane %v632, 4
    %v634 = vadd.f32 %v632, %v633
    %v635 = vrot.slane %v634, 2
    %v636 = vadd.f32 %v634, %v635
    %v637 = vrot.slane %v636, 1
    %v638 = vadd.f32 %v636, %v637
    %v639 = vadd.f32 %v587, %v589
    %v640 = vadd.f32 %v639, %v591
    %v641 = vadd.f32 %v640, %v593
    %v642 = vadd.f32 %v641, %v595
    %v643 = vadd.f32 %v642, %v597
    %v644 = vadd.f32 %v643, %v599
    %v645 = vadd.f32 %v644, %v601
    %v646 = vadd.f32 %v645, %v603
    %v647 = vadd.f32 %v646, %v605
    %v648 = vadd.f32 %v647, %v607
    %v649 = vadd.f32 %v648, %v609
    %v650 = vadd.f32 %v649, %v611
    %v651 = vadd.f32 %v650, %v613
    %v652 = vadd.f32 %v651, %v615
    %v653 = vadd.f32 %v652, %v617
    %v654 = vrot.slane %v653, 4
    %v655 = vadd.f32 %v653, %v654
    %v656 = vrot.slane %v655, 2
    %v657 = vadd.f32 %v655, %v656
    %v658 = vrot.slane %v657, 1
    %v659 = vadd.f32 %v657, %v658
    %s660 = sld [smem:[#allocation2]]
    %v661 = vstv %s660
    %v662 = vadd.f32 %v638, %v661
    %v663 = vadd.f32 %v659, %v661
    %v664 = vxor.u32 %v662, 2147483648
    %v665 = vxor.u32 %v663, 2147483648
    %v666 = vmul.f32 %v664, 1.442695
    %v667 = vpow.pop %v666
    %v668 = vmul.f32 %v665, 1.442695
    %v669 = vpow.pop %v668
    %v670 = vadd.f32 %v667, 1.0
    %v671 = vadd.f32 %v669, 1.0
    %v672 = vrcp.pop %v670
    %v673 = vmul.f32 1.0, %v672
    %v674 = vrcp.pop %v671
    %v675 = vmul.f32 1.0, %v674
    %v678 = vcombine.low %v673, %v675
    %v680 = vunpack.c.l.s4 1966171168
    %v681 = vunpack.c.0.s8 %v680
    %v682 = vlaneseq
    %v683 = vshrl.u32 %v682, 7
    %v684 = vsub.s32 %v681, %v683
    %v685 = vrot.slane %v678, %v684
    %v687 = vunpack.c.l.s4 1966171168
    %v688 = vunpack.c.0.s8 %v687
    %v689 = vlaneseq
    %v690 = vshrl.u32 %v689, 7
    %v691 = vsub.s32 %v688, %v690
    %v692 = vrot.slane %v685, %v691
    %v694 = vlaneseq
    %vm695 = vcmp.ge.s32.totalorder %v694, 0
    %vm696 = vcmp.lt.s32.totalorder %v694, 256
    %vm697 = vmand %vm695, %vm696
    %698 = vst.msk [vmem:[#allocation9] sm:$0x3] %vm697, %v692
    // Predicated region
    $region38: #{tpu_custom_call.1} parent=1 // pred_check
      _
    $region39: #{tpu_custom_call.1} parent=1 // pred_check_branch
      %700 = sbr.rel (0) target = $region41
    $region40: #{tpu_custom_call.1} parent=1 // pred_region
      %s702 = ssub.s32 32, 32
      %703 = vsyncadd [#allocation5], %s702
      %s705 = sshll.u32 [#allocation9], 4
      %s706 = int_to_ptr.vmem [resolvable:$true] %s705
      %708 = dma.vmem_to_hbm [thread:$0]  %s706, 32, %s6, [#allocation5]
    $region41: #{tpu_custom_call.1} parent=1 // pred_fallthru
      _
    // Predicated region
    $region42: #{tpu_custom_call.1} parent=1 // pred_check
      _
    $region43: #{tpu_custom_call.1} parent=1 // pred_check_branch
      %710 = sbr.rel (0) target = $region45
    $region44: #{tpu_custom_call.1} parent=1 // pred_region
      %711 = dma.done [#allocation5], 32
    $region45: #{tpu_custom_call.1} parent=1 // pred_fallthru
      _
    %712 = vsyncpa [#allocation4], 1
    %713 = vsyncpa [#allocation7], 1
    %714 = vsyncpa [#allocation5], 1

</llo_original>
